<compile_context>
chip_gen: v7x
topology: tpu7x:2x2x1
jax: 0.10.0
libtpu: 0.0.40
codegen_flags: <defaults>
</compile_context>

<pallas_src>
import numpy as np
import jax
import jax.numpy as jnp
from jax import lax
from jax.experimental import pallas as pl
from jax.experimental.pallas import tpu as pltpu

LRELU_SLOPE = 0.2
BN_EPS = 1e-5


# ------------------------------ kernel helpers ------------------------------ #

def _lrelu(y):
  return jnp.where(y >= 0, y, LRELU_SLOPE * y)


def _lane_allreduce_per_channel(v, w, c):
  """v: (rows, w*c). Each lane ends with the sum over the w lanes sharing its
  channel (lane index mod c). Uses XLU lane rotations (cheap slot)."""
  total = w * c
  if w & (w - 1) == 0:                       # power-of-two tree
    shift = c
    while shift < total:
      v = v + pltpu.roll(v, shift, 1)
      shift *= 2
    return v
  acc = v                                    # generic fallback
  for i in range(1, w):
    acc = acc + pltpu.roll(v, i * c, 1)
  return acc


def _bn_lane_dense(y, gamma_t, beta_t, w, c, count):
  """Training-mode BatchNorm on lane-dense (rows, w*c) f32 data.

  One pass over the data (sum + sum-of-squares), reduced per channel with a
  SINGLE stacked roll-tree; gamma_t/beta_t are already tiled to (1, w*c)."""
  s = jnp.sum(y, axis=0, keepdims=True)               # (1, w*c)
  ss = jnp.sum(y * y, axis=0, keepdims=True)          # (1, w*c)
  stats = jnp.concatenate([s, ss], axis=0)             # (2, w*c) -> one roll-tree
  stats = _lane_allreduce_per_channel(stats, w, c)
  inv_n = 1.0 / count
  mean = stats[0:1] * inv_n
  var = stats[1:2] * inv_n - mean * mean
  # TODO(synk): use a shifted / two-pass variance when count grows (gridded
  # version); one-pass E[x^2]-E[x]^2 in f32 loses precision when |mean| >> std.
  inv_std = lax.rsqrt(var + BN_EPS)
  return (y - mean) * (inv_std * gamma_t) + beta_t


def _shifted_rows(act_f32, mask_top, mask_bot, rows):
  """Row-shifted H-halo views of a lane-dense (rows, W*C) slab.

  XLU sublane rolls (+1 / -1 row) with per-image boundary masking — no padded
  scratch buffer, no unaligned sublane slices."""
  top = jnp.where(mask_top, 0.0, pltpu.roll(act_f32, 1, 0))         # row r -> act[r-1]
  bot = jnp.where(mask_bot, 0.0, pltpu.roll(act_f32, rows - 1, 0))  # row r -> act[r+1]
  return top.astype(jnp.bfloat16), bot.astype(jnp.bfloat16)


# --------------------------------- kernel ----------------------------------- #

def _make_kernel(N, H, W, Cin, Cmid, Cout, has_expand):
  M = N * H
  Nmid = W * Cmid
  count = float(N * H * W)

  def kernel(x_ref, w1mid_ref, w1edge_ref, g1_ref, b1_ref,
             w2_ref, g2_ref, b2_ref, o_ref):
    x = x_ref[...]                                     # (M, W*Cin) f32, lane-dense
    x_bf = x.astype(jnp.bfloat16)

    # Per-row image-boundary masks, shared by both convs (hoisted, computed once).
    row = lax.broadcasted_iota(jnp.int32, (M, 1), 0)
    mask_top = (row % H) == 0
    mask_bot = (row % H) == (H - 1)

    # ---- conv1 (3x3, pad=1, no bias); dh=1 tap reads x directly and (when
    #      inc != outc) also produces the fused 1x1 conv_expand identity. ----
    p_mid = jnp.dot(x_bf, w1mid_ref[...], preferred_element_type=jnp.float32)
    if has_expand:
      y = p_mid[:, :Nmid]
      identity = p_mid[:, Nmid:]                       # (M, W*Cout) f32
    else:
      y = p_mid
      identity = x                                     # f32 residual
    top, bot = _shifted_rows(x, mask_top, mask_bot, M)
    y = y + jnp.dot(top, w1edge_ref[0], preferred_element_type=jnp.float32)
    y = y + jnp.dot(bot, w1edge_ref[1], preferred_element_type=jnp.float32)

    # bn1 -> LeakyReLU(0.2)
    y = _lrelu(_bn_lane_dense(y, g1_ref[...], b1_ref[...], W, Cmid, count))

    # ---- conv2 (3x3, pad=1, no bias) ----
    z = jnp.dot(y.astype(jnp.bfloat16), w2_ref[1],
                preferred_element_type=jnp.float32)
    top, bot = _shifted_rows(y, mask_top, mask_bot, M)
    z = z + jnp.dot(top, w2_ref[0], preferred_element_type=jnp.float32)
    z = z + jnp.dot(bot, w2_ref[2], preferred_element_type=jnp.float32)

    # bn2 -> residual add -> LeakyReLU(0.2); dense 128-lane store
    z = _bn_lane_dense(z, g2_ref[...], b2_ref[...], W, Cout, count)
    o_ref[...] = _lrelu(z + identity).astype(o_ref.dtype)

  return kernel


# --------------------------- host-side weight prep -------------------------- #

def _banded_conv_weights(w_oihw, W):
  """OIHW (Cout, Cin, 3, 3) -> (3, W*Cin, W*Cout) banded matrices, W-direction
  zero padding folded into the band (out-of-range dw blocks omitted).
  Built with jnp ops so it is jit-safe with traced weights."""
  w = jnp.transpose(jnp.asarray(w_oihw, jnp.float32), (2, 3, 1, 0))  # -> HWIO
  bands = []
  for dh in range(3):
    m = None
    for dw in range(3):
      # output column wo reads input column wi = wo + dw - 1 (only when in range)
      sel = jnp.eye(W, W, k=1 - dw, dtype=jnp.float32)
      blk = jnp.kron(sel, w[dh, dw])                   # (W*Cin, W*Cout)
      m = blk if m is None else m + blk
    bands.append(m)
  return jnp.stack(bands)                              # f32; cast by caller


# ------------------------------- JAX wrapper -------------------------------- #

def residual_block(x_nchw, w1_oihw, g1, b1, w2_oihw, g2, b2, wexp_oihw=None):
  """Fused ResidualBlock forward. Input/Output are NCHW like PyTorch."""
  N, Cin, H, W = x_nchw.shape
  Cmid = w1_oihw.shape[0]
  Cout = w2_oihw.shape[0]
  has_expand = wexp_oihw is not None

  # Layout plumbing (plain XLA glue): NCHW -> lane-dense (N*H, W*C) slab.
  x2d = jnp.transpose(x_nchw, (0, 2, 3, 1)).reshape(N * H, W * Cin)

  band1 = _banded_conv_weights(w1_oihw, W)             # (3, W*Cin, W*Cmid)
  band2 = _banded_conv_weights(w2_oihw, W)             # (3, W*Cmid, W*Cout)

  w1mid = band1[1]
  if has_expand:
    # Fuse the 1x1 conv_expand into conv1's dh=1 band as extra output columns:
    # one LHS sweep produces both the dh=1 conv1 partial and the identity branch.
    wexp_mat = jnp.asarray(wexp_oihw, jnp.float32)[:, :, 0, 0].T     # (Cin, Cout)
    wexp_blk = jnp.kron(jnp.eye(W, dtype=jnp.float32), wexp_mat)     # (W*Cin, W*Cout)
    w1mid = jnp.concatenate([w1mid, wexp_blk], axis=1)
  w1mid = w1mid.astype(jnp.bfloat16)
  w1edge = jnp.stack([band1[0], band1[2]]).astype(jnp.bfloat16)      # dh=0, dh=2
  band2 = band2.astype(jnp.bfloat16)

  g1_t = jnp.tile(jnp.asarray(g1, jnp.float32), W).reshape(1, W * Cmid)
  b1_t = jnp.tile(jnp.asarray(b1, jnp.float32), W).reshape(1, W * Cmid)
  g2_t = jnp.tile(jnp.asarray(g2, jnp.float32), W).reshape(1, W * Cout)
  b2_t = jnp.tile(jnp.asarray(b2, jnp.float32), W).reshape(1, W * Cout)

  vmem = pl.BlockSpec(memory_space=pltpu.MemorySpace.VMEM)
  out2d = pl.pallas_call(
      _make_kernel(N, H, W, Cin, Cmid, Cout, has_expand),
      out_shape=jax.ShapeDtypeStruct((N * H, W * Cout), x_nchw.dtype),
      in_specs=[vmem] * 8,
      out_specs=vmem,
      # Modest per-call scoped-VMEM budget, safe on v5e/v6e (128 MiB) and
      # v7x (64 MiB physical); everything at this shape is a few hundred KiB.
      compiler_params=pltpu.CompilerParams(vmem_limit_bytes=32 * 1024 * 1024),
  )(x2d, w1mid, w1edge, g1_t, b1_t, band2, g2_t, b2_t)

  return jnp.transpose(out2d.reshape(N, H, W, Cout), (0, 3, 1, 2))


# ----------------------------- pure-JAX reference --------------------------- #

def residual_block_ref(x, w1, g1, b1, w2, g2, b2, wexp=None):
  """Module math (training-mode BN) with the same bf16-operand / f32-accumulate
  matmul precision the kernel uses; BN / activations in f32."""
  dn = ('NCHW', 'OIHW', 'NCHW')

  def conv(v, w, pad):
    return lax.conv_general_dilated(
        v.astype(jnp.bfloat16), w.astype(jnp.bfloat16), (1, 1), pad,
        dimension_numbers=dn, preferred_element_type=jnp.float32)

  def bn(v, g, b):
    mu = jnp.mean(v, axis=(0, 2, 3), keepdims=True)
    var = jnp.mean((v - mu) ** 2, axis=(0, 2, 3), keepdims=True)
    return ((v - mu) * lax.rsqrt(var + BN_EPS) * g.reshape(1, -1, 1, 1)
            + b.reshape(1, -1, 1, 1))

  def lrelu(v):
    return jnp.where(v >= 0, v, LRELU_SLOPE * v)

  identity = x if wexp is None else conv(x, wexp, ((0, 0), (0, 0)))
  y = lrelu(bn(conv(x, w1, ((1, 1), (1, 1))), g1, b1))
  y = bn(conv(y, w2, ((1, 1), (1, 1))), g2, b2) + identity
  return lrelu(y)


# ---------------------------------- main ------------------------------------ #

if __name__ == "__main__":
  # ResidualBlock(inc=8, outc=8), groups=1, scale=1.0 -> midc=8, conv_expand=None.
  N, C, H, W = 2, 8, 16, 16

  key = jax.random.PRNGKey(0)
  k = jax.random.split(key, 7)
  x = jax.random.normal(k[0], (N, C, H, W), jnp.float32)
  w1 = 0.1 * jax.random.normal(k[1], (C, C, 3, 3), jnp.float32)   # conv1 weight
  w2 = 0.1 * jax.random.normal(k[2], (C, C, 3, 3), jnp.float32)   # conv2 weight
  g1 = 1.0 + 0.1 * jax.random.normal(k[3], (C,), jnp.float32)     # bn1 gamma
  b1 = 0.1 * jax.random.normal(k[4], (C,), jnp.float32)           # bn1 beta
  g2 = 1.0 + 0.1 * jax.random.normal(k[5], (C,), jnp.float32)     # bn2 gamma
  b2 = 0.1 * jax.random.normal(k[6], (C,), jnp.float32)           # bn2 beta

  out = jax.block_until_ready(residual_block(x, w1, g1, b1, w2, g2, b2))
  ref = jax.block_until_ready(residual_block_ref(x, w1, g1, b1, w2, g2, b2))

  # Both paths use bf16 MXU operands with f32 accumulation; tolerance covers
  # accumulation-order, one-pass-variance and EUP-rsqrt differences only.
  np.testing.assert_allclose(np.asarray(out), np.asarray(ref),
                             rtol=5e-3, atol=5e-3)
  print("KERNEL_OK")
</pallas_src>

<mosaic_0001>
module attributes {stable_mosaic.version = 11 : i64} {
  func.func @kernel(%arg0: memref<32x128xf32, #tpu.memory_space<vmem>>, %arg1: memref<128x128xbf16, #tpu.memory_space<vmem>>, %arg2: memref<2x128x128xbf16, #tpu.memory_space<vmem>>, %arg3: memref<1x128xf32, #tpu.memory_space<vmem>>, %arg4: memref<1x128xf32, #tpu.memory_space<vmem>>, %arg5: memref<3x128x128xbf16, #tpu.memory_space<vmem>>, %arg6: memref<1x128xf32, #tpu.memory_space<vmem>>, %arg7: memref<1x128xf32, #tpu.memory_space<vmem>>, %arg8: memref<32x128xf32, #tpu.memory_space<vmem>>) attributes {dimension_semantics = [], scalar_prefetch = 0 : i64, scratch_operands = 0 : i64, tpu.core_type = #tpu.core_type<tc>} {
    %c0 = arith.constant 0 : index
    %c0_0 = arith.constant 0 : index
    %0 = vector.load %arg0[%c0, %c0_0] : memref<32x128xf32, #tpu.memory_space<vmem>>, vector<32x128xf32>
    %1 = arith.truncf %0 : vector<32x128xf32> to vector<32x128xbf16>
    %2 = tpu.iota {dimensions = array<i32: 0>} : vector<32x1xi32>
    %c16_i32 = arith.constant 16 : i32
    %c0_i32 = arith.constant 0 : i32
    %3 = arith.cmpi eq, %c16_i32, %c0_i32 : i32
    %c1_i32 = arith.constant 1 : i32
    %4 = arith.select %3, %c1_i32, %c16_i32 : i32
    %5 = vector.broadcast %4 : i32 to vector<32x1xi32>
    %6 = arith.remsi %2, %5 : vector<32x1xi32>
    %c0_i32_1 = arith.constant 0 : i32
    %7 = vector.broadcast %c0_i32_1 : i32 to vector<32x1xi32>
    %8 = arith.cmpi ne, %6, %7 : vector<32x1xi32>
    %c0_i32_2 = arith.constant 0 : i32
    %9 = vector.broadcast %c0_i32_2 : i32 to vector<32x1xi32>
    %10 = arith.cmpi slt, %6, %9 : vector<32x1xi32>
    %c0_i32_3 = arith.constant 0 : i32
    %11 = arith.cmpi slt, %4, %c0_i32_3 : i32
    %12 = vector.broadcast %11 : i1 to vector<32x1xi1>
    %13 = vector.broadcast %12 : vector<32x1xi1> to vector<32x1xi1>
    %14 = arith.xori %10, %13 : vector<32x1xi1>
    %15 = arith.andi %14, %8 : vector<32x1xi1>
    %16 = vector.broadcast %4 : i32 to vector<32x1xi32>
    %17 = arith.addi %6, %16 : vector<32x1xi32>
    %18 = arith.select %15, %17, %6 : vector<32x1xi1>, vector<32x1xi32>
    %c0_i32_4 = arith.constant 0 : i32
    %19 = vector.broadcast %c0_i32_4 : i32 to vector<32x1xi32>
    %20 = arith.cmpi eq, %18, %19 : vector<32x1xi32>
    %c16_i32_5 = arith.constant 16 : i32
    %c0_i32_6 = arith.constant 0 : i32
    %21 = arith.cmpi eq, %c16_i32_5, %c0_i32_6 : i32
    %c1_i32_7 = arith.constant 1 : i32
    %22 = arith.select %21, %c1_i32_7, %c16_i32_5 : i32
    %23 = vector.broadcast %22 : i32 to vector<32x1xi32>
    %24 = arith.remsi %2, %23 : vector<32x1xi32>
    %c0_i32_8 = arith.constant 0 : i32
    %25 = vector.broadcast %c0_i32_8 : i32 to vector<32x1xi32>
    %26 = arith.cmpi ne, %24, %25 : vector<32x1xi32>
    %c0_i32_9 = arith.constant 0 : i32
    %27 = vector.broadcast %c0_i32_9 : i32 to vector<32x1xi32>
    %28 = arith.cmpi slt, %24, %27 : vector<32x1xi32>
    %c0_i32_10 = arith.constant 0 : i32
    %29 = arith.cmpi slt, %22, %c0_i32_10 : i32
    %30 = vector.broadcast %29 : i1 to vector<32x1xi1>
    %31 = vector.broadcast %30 : vector<32x1xi1> to vector<32x1xi1>
    %32 = arith.xori %28, %31 : vector<32x1xi1>
    %33 = arith.andi %32, %26 : vector<32x1xi1>
    %34 = vector.broadcast %22 : i32 to vector<32x1xi32>
    %35 = arith.addi %24, %34 : vector<32x1xi32>
    %36 = arith.select %33, %35, %24 : vector<32x1xi1>, vector<32x1xi32>
    %c15_i32 = arith.constant 15 : i32
    %37 = vector.broadcast %c15_i32 : i32 to vector<32x1xi32>
    %38 = arith.cmpi eq, %36, %37 : vector<32x1xi32>
    %c0_11 = arith.constant 0 : index
    %c0_12 = arith.constant 0 : index
    %39 = vector.load %arg1[%c0_11, %c0_12] : memref<128x128xbf16, #tpu.memory_space<vmem>>, vector<128x128xbf16>
    %cst = arith.constant dense<0.000000e+00> : vector<32x128xf32>
    %40 = tpu.matmul %1, %39, %cst {dimension_numbers = #tpu.dot_dimension_numbers<[1], [0], [0], [1], [0, 0, 1, 1], [], []>} : vector<32x128xbf16>, vector<128x128xbf16>, vector<32x128xf32> -> vector<32x128xf32>
    %c1_i32_13 = arith.constant 1 : i32
    %41 = tpu.dynamic_rotate %0 by %c1_i32_13 dim 0 : vector<32x128xf32>, i32 -> vector<32x128xf32>
    %cst_14 = arith.constant 0.000000e+00 : f32
    %42 = vector.shape_cast %20 : vector<32x1xi1> to vector<32x1xi1>
    %43 = vector.broadcast %42 : vector<32x1xi1> to vector<32x128xi1>
    %44 = vector.broadcast %cst_14 : f32 to vector<32x128xf32>
    %45 = arith.select %43, %44, %41 : vector<32x128xi1>, vector<32x128xf32>
    %c31_i32 = arith.constant 31 : i32
    %46 = tpu.dynamic_rotate %0 by %c31_i32 dim 0 : vector<32x128xf32>, i32 -> vector<32x128xf32>
    %cst_15 = arith.constant 0.000000e+00 : f32
    %47 = vector.shape_cast %38 : vector<32x1xi1> to vector<32x1xi1>
    %48 = vector.broadcast %47 : vector<32x1xi1> to vector<32x128xi1>
    %49 = vector.broadcast %cst_15 : f32 to vector<32x128xf32>
    %50 = arith.select %48, %49, %46 : vector<32x128xi1>, vector<32x128xf32>
    %51 = arith.truncf %45 : vector<32x128xf32> to vector<32x128xbf16>
    %52 = arith.truncf %50 : vector<32x128xf32> to vector<32x128xbf16>
    %c0_16 = arith.constant 0 : index
    %c0_17 = arith.constant 0 : index
    %c0_18 = arith.constant 0 : index
    %53 = vector.load %arg2[%c0_16, %c0_17, %c0_18] : memref<2x128x128xbf16, #tpu.memory_space<vmem>>, vector<1x128x128xbf16>
    %54 = vector.shape_cast %53 : vector<1x128x128xbf16> to vector<128x128xbf16>
    %cst_19 = arith.constant dense<0.000000e+00> : vector<32x128xf32>
    %55 = tpu.matmul %51, %54, %cst_19 {dimension_numbers = #tpu.dot_dimension_numbers<[1], [0], [0], [1], [0, 0, 1, 1], [], []>} : vector<32x128xbf16>, vector<128x128xbf16>, vector<32x128xf32> -> vector<32x128xf32>
    %56 = arith.addf %40, %55 : vector<32x128xf32>
    %c1 = arith.constant 1 : index
    %c0_20 = arith.constant 0 : index
    %c0_21 = arith.constant 0 : index
    %57 = vector.load %arg2[%c1, %c0_20, %c0_21] : memref<2x128x128xbf16, #tpu.memory_space<vmem>>, vector<1x128x128xbf16>
    %58 = vector.shape_cast %57 : vector<1x128x128xbf16> to vector<128x128xbf16>
    %cst_22 = arith.constant dense<0.000000e+00> : vector<32x128xf32>
    %59 = tpu.matmul %52, %58, %cst_22 {dimension_numbers = #tpu.dot_dimension_numbers<[1], [0], [0], [1], [0, 0, 1, 1], [], []>} : vector<32x128xbf16>, vector<128x128xbf16>, vector<32x128xf32> -> vector<32x128xf32>
    %60 = arith.addf %56, %59 : vector<32x128xf32>
    %c0_23 = arith.constant 0 : index
    %c0_24 = arith.constant 0 : index
    %61 = vector.load %arg3[%c0_23, %c0_24] : memref<1x128xf32, #tpu.memory_space<vmem>>, vector<1x128xf32>
    %c0_25 = arith.constant 0 : index
    %c0_26 = arith.constant 0 : index
    %62 = vector.load %arg4[%c0_25, %c0_26] : memref<1x128xf32, #tpu.memory_space<vmem>>, vector<1x128xf32>
    %cst_27 = arith.constant dense<0.000000e+00> : vector<128xf32>
    %63 = vector.multi_reduction <add>, %60, %cst_27 [0] : vector<32x128xf32> to vector<128xf32>
    %64 = vector.shape_cast %63 : vector<128xf32> to vector<1x128xf32>
    %65 = arith.mulf %60, %60 : vector<32x128xf32>
    %cst_28 = arith.constant dense<0.000000e+00> : vector<128xf32>
    %66 = vector.multi_reduction <add>, %65, %cst_28 [0] : vector<32x128xf32> to vector<128xf32>
    %67 = vector.shape_cast %66 : vector<128xf32> to vector<1x128xf32>
    %68 = tpu.concatenate %64, %67 in 0 : vector<1x128xf32>, vector<1x128xf32> -> vector<2x128xf32>
    %c8_i32 = arith.constant 8 : i32
    %69 = tpu.dynamic_rotate %68 by %c8_i32 dim 1 : vector<2x128xf32>, i32 -> vector<2x128xf32>
    %70 = arith.addf %68, %69 : vector<2x128xf32>
    %c16_i32_29 = arith.constant 16 : i32
    %71 = tpu.dynamic_rotate %70 by %c16_i32_29 dim 1 : vector<2x128xf32>, i32 -> vector<2x128xf32>
    %72 = arith.addf %70, %71 : vector<2x128xf32>
    %c32_i32 = arith.constant 32 : i32
    %73 = tpu.dynamic_rotate %72 by %c32_i32 dim 1 : vector<2x128xf32>, i32 -> vector<2x128xf32>
    %74 = arith.addf %72, %73 : vector<2x128xf32>
    %c64_i32 = arith.constant 64 : i32
    %75 = tpu.dynamic_rotate %74 by %c64_i32 dim 1 : vector<2x128xf32>, i32 -> vector<2x128xf32>
    %76 = arith.addf %74, %75 : vector<2x128xf32>
    %77 = vector.extract_strided_slice %76 {offsets = [0, 0], sizes = [1, 128], strides = [1, 1]} : vector<2x128xf32> to vector<1x128xf32>
    %cst_30 = arith.constant 0.001953125 : f32
    %78 = vector.broadcast %cst_30 : f32 to vector<1x128xf32>
    %79 = arith.mulf %77, %78 : vector<1x128xf32>
    %80 = vector.extract_strided_slice %76 {offsets = [1, 0], sizes = [1, 128], strides = [1, 1]} : vector<2x128xf32> to vector<1x128xf32>
    %cst_31 = arith.constant 0.001953125 : f32
    %81 = vector.broadcast %cst_31 : f32 to vector<1x128xf32>
    %82 = arith.mulf %80, %81 : vector<1x128xf32>
    %83 = arith.mulf %79, %79 : vector<1x128xf32>
    %84 = arith.subf %82, %83 : vector<1x128xf32>
    %cst_32 = arith.constant 9.99999974E-6 : f32
    %85 = vector.broadcast %cst_32 : f32 to vector<1x128xf32>
    %86 = arith.addf %84, %85 : vector<1x128xf32>
    %87 = math.rsqrt %86 : vector<1x128xf32>
    %88 = vector.broadcast %79 : vector<1x128xf32> to vector<32x128xf32>
    %89 = arith.subf %60, %88 : vector<32x128xf32>
    %90 = arith.mulf %87, %61 : vector<1x128xf32>
    %91 = vector.broadcast %90 : vector<1x128xf32> to vector<32x128xf32>
    %92 = arith.mulf %89, %91 : vector<32x128xf32>
    %93 = vector.broadcast %62 : vector<1x128xf32> to vector<32x128xf32>
    %94 = arith.addf %92, %93 : vector<32x128xf32>
    %cst_33 = arith.constant 0.000000e+00 : f32
    %95 = vector.broadcast %cst_33 : f32 to vector<32x128xf32>
    %96 = arith.cmpf oge, %94, %95 : vector<32x128xf32>
    %cst_34 = arith.constant 2.000000e-01 : f32
    %97 = vector.broadcast %cst_34 : f32 to vector<32x128xf32>
    %98 = arith.mulf %97, %94 : vector<32x128xf32>
    %99 = arith.select %96, %94, %98 : vector<32x128xi1>, vector<32x128xf32>
    %100 = arith.truncf %99 : vector<32x128xf32> to vector<32x128xbf16>
    %c1_35 = arith.constant 1 : index
    %c0_36 = arith.constant 0 : index
    %c0_37 = arith.constant 0 : index
    %101 = vector.load %arg5[%c1_35, %c0_36, %c0_37] : memref<3x128x128xbf16, #tpu.memory_space<vmem>>, vector<1x128x128xbf16>
    %102 = vector.shape_cast %101 : vector<1x128x128xbf16> to vector<128x128xbf16>
    %cst_38 = arith.constant dense<0.000000e+00> : vector<32x128xf32>
    %103 = tpu.matmul %100, %102, %cst_38 {dimension_numbers = #tpu.dot_dimension_numbers<[1], [0], [0], [1], [0, 0, 1, 1], [], []>} : vector<32x128xbf16>, vector<128x128xbf16>, vector<32x128xf32> -> vector<32x128xf32>
    %c1_i32_39 = arith.constant 1 : i32
    %104 = tpu.dynamic_rotate %99 by %c1_i32_39 dim 0 : vector<32x128xf32>, i32 -> vector<32x128xf32>
    %cst_40 = arith.constant 0.000000e+00 : f32
    %105 = vector.shape_cast %20 : vector<32x1xi1> to vector<32x1xi1>
    %106 = vector.broadcast %105 : vector<32x1xi1> to vector<32x128xi1>
    %107 = vector.broadcast %cst_40 : f32 to vector<32x128xf32>
    %108 = arith.select %106, %107, %104 : vector<32x128xi1>, vector<32x128xf32>
    %c31_i32_41 = arith.constant 31 : i32
    %109 = tpu.dynamic_rotate %99 by %c31_i32_41 dim 0 : vector<32x128xf32>, i32 -> vector<32x128xf32>
    %cst_42 = arith.constant 0.000000e+00 : f32
    %110 = vector.shape_cast %38 : vector<32x1xi1> to vector<32x1xi1>
    %111 = vector.broadcast %110 : vector<32x1xi1> to vector<32x128xi1>
    %112 = vector.broadcast %cst_42 : f32 to vector<32x128xf32>
    %113 = arith.select %111, %112, %109 : vector<32x128xi1>, vector<32x128xf32>
    %114 = arith.truncf %108 : vector<32x128xf32> to vector<32x128xbf16>
    %115 = arith.truncf %113 : vector<32x128xf32> to vector<32x128xbf16>
    %c0_43 = arith.constant 0 : index
    %c0_44 = arith.constant 0 : index
    %c0_45 = arith.constant 0 : index
    %116 = vector.load %arg5[%c0_43, %c0_44, %c0_45] : memref<3x128x128xbf16, #tpu.memory_space<vmem>>, vector<1x128x128xbf16>
    %117 = vector.shape_cast %116 : vector<1x128x128xbf16> to vector<128x128xbf16>
    %cst_46 = arith.constant dense<0.000000e+00> : vector<32x128xf32>
    %118 = tpu.matmul %114, %117, %cst_46 {dimension_numbers = #tpu.dot_dimension_numbers<[1], [0], [0], [1], [0, 0, 1, 1], [], []>} : vector<32x128xbf16>, vector<128x128xbf16>, vector<32x128xf32> -> vector<32x128xf32>
    %119 = arith.addf %103, %118 : vector<32x128xf32>
    %c2 = arith.constant 2 : index
    %c0_47 = arith.constant 0 : index
    %c0_48 = arith.constant 0 : index
    %120 = vector.load %arg5[%c2, %c0_47, %c0_48] : memref<3x128x128xbf16, #tpu.memory_space<vmem>>, vector<1x128x128xbf16>
    %121 = vector.shape_cast %120 : vector<1x128x128xbf16> to vector<128x128xbf16>
    %cst_49 = arith.constant dense<0.000000e+00> : vector<32x128xf32>
    %122 = tpu.matmul %115, %121, %cst_49 {dimension_numbers = #tpu.dot_dimension_numbers<[1], [0], [0], [1], [0, 0, 1, 1], [], []>} : vector<32x128xbf16>, vector<128x128xbf16>, vector<32x128xf32> -> vector<32x128xf32>
    %123 = arith.addf %119, %122 : vector<32x128xf32>
    %c0_50 = arith.constant 0 : index
    %c0_51 = arith.constant 0 : index
    %124 = vector.load %arg6[%c0_50, %c0_51] : memref<1x128xf32, #tpu.memory_space<vmem>>, vector<1x128xf32>
    %c0_52 = arith.constant 0 : index
    %c0_53 = arith.constant 0 : index
    %125 = vector.load %arg7[%c0_52, %c0_53] : memref<1x128xf32, #tpu.memory_space<vmem>>, vector<1x128xf32>
    %cst_54 = arith.constant dense<0.000000e+00> : vector<128xf32>
    %126 = vector.multi_reduction <add>, %123, %cst_54 [0] : vector<32x128xf32> to vector<128xf32>
    %127 = vector.shape_cast %126 : vector<128xf32> to vector<1x128xf32>
    %128 = arith.mulf %123, %123 : vector<32x128xf32>
    %cst_55 = arith.constant dense<0.000000e+00> : vector<128xf32>
    %129 = vector.multi_reduction <add>, %128, %cst_55 [0] : vector<32x128xf32> to vector<128xf32>
    %130 = vector.shape_cast %129 : vector<128xf32> to vector<1x128xf32>
    %131 = tpu.concatenate %127, %130 in 0 : vector<1x128xf32>, vector<1x128xf32> -> vector<2x128xf32>
    %c8_i32_56 = arith.constant 8 : i32
    %132 = tpu.dynamic_rotate %131 by %c8_i32_56 dim 1 : vector<2x128xf32>, i32 -> vector<2x128xf32>
    %133 = arith.addf %131, %132 : vector<2x128xf32>
    %c16_i32_57 = arith.constant 16 : i32
    %134 = tpu.dynamic_rotate %133 by %c16_i32_57 dim 1 : vector<2x128xf32>, i32 -> vector<2x128xf32>
    %135 = arith.addf %133, %134 : vector<2x128xf32>
    %c32_i32_58 = arith.constant 32 : i32
    %136 = tpu.dynamic_rotate %135 by %c32_i32_58 dim 1 : vector<2x128xf32>, i32 -> vector<2x128xf32>
    %137 = arith.addf %135, %136 : vector<2x128xf32>
    %c64_i32_59 = arith.constant 64 : i32
    %138 = tpu.dynamic_rotate %137 by %c64_i32_59 dim 1 : vector<2x128xf32>, i32 -> vector<2x128xf32>
    %139 = arith.addf %137, %138 : vector<2x128xf32>
    %140 = vector.extract_strided_slice %139 {offsets = [0, 0], sizes = [1, 128], strides = [1, 1]} : vector<2x128xf32> to vector<1x128xf32>
    %cst_60 = arith.constant 0.001953125 : f32
    %141 = vector.broadcast %cst_60 : f32 to vector<1x128xf32>
    %142 = arith.mulf %140, %141 : vector<1x128xf32>
    %143 = vector.extract_strided_slice %139 {offsets = [1, 0], sizes = [1, 128], strides = [1, 1]} : vector<2x128xf32> to vector<1x128xf32>
    %cst_61 = arith.constant 0.001953125 : f32
    %144 = vector.broadcast %cst_61 : f32 to vector<1x128xf32>
    %145 = arith.mulf %143, %144 : vector<1x128xf32>
    %146 = arith.mulf %142, %142 : vector<1x128xf32>
    %147 = arith.subf %145, %146 : vector<1x128xf32>
    %cst_62 = arith.constant 9.99999974E-6 : f32
    %148 = vector.broadcast %cst_62 : f32 to vector<1x128xf32>
    %149 = arith.addf %147, %148 : vector<1x128xf32>
    %150 = math.rsqrt %149 : vector<1x128xf32>
    %151 = vector.broadcast %142 : vector<1x128xf32> to vector<32x128xf32>
    %152 = arith.subf %123, %151 : vector<32x128xf32>
    %153 = arith.mulf %150, %124 : vector<1x128xf32>
    %154 = vector.broadcast %153 : vector<1x128xf32> to vector<32x128xf32>
    %155 = arith.mulf %152, %154 : vector<32x128xf32>
    %156 = vector.broadcast %125 : vector<1x128xf32> to vector<32x128xf32>
    %157 = arith.addf %155, %156 : vector<32x128xf32>
    %158 = arith.addf %157, %0 : vector<32x128xf32>
    %cst_63 = arith.constant 0.000000e+00 : f32
    %159 = vector.broadcast %cst_63 : f32 to vector<32x128xf32>
    %160 = arith.cmpf oge, %158, %159 : vector<32x128xf32>
    %cst_64 = arith.constant 2.000000e-01 : f32
    %161 = vector.broadcast %cst_64 : f32 to vector<32x128xf32>
    %162 = arith.mulf %161, %158 : vector<32x128xf32>
    %163 = arith.select %160, %158, %162 : vector<32x128xi1>, vector<32x128xf32>
    %c0_65 = arith.constant 0 : index
    %c0_66 = arith.constant 0 : index
    %164 = vector.load %arg8[%c0_65, %c0_66] : memref<32x128xf32, #tpu.memory_space<vmem>>, vector<32x128xf32>
    tpu.vector_store %arg8[%c0_65, %c0_66], %163 {strides = array<i32>} : memref<32x128xf32, #tpu.memory_space<vmem>>, vector<32x128xf32>,
    return
  }
}

</mosaic_0001>

<llo_original>
// kernel: tpu_custom_call.1
$region0: #{tpu_custom_call.1}
  #allocation0 [shape = 'u32[]', space=smem, size = 0x4, offset = 0x4, fixed_abs, tag = 'smem constant byte address 0x4 - core index']
  #allocation1 [shape = 'u32[144,128]{1,0:T(1,128)}', space=vmem, size = 0x12000, scoped, tag = 'internal scratch']
  %s0 = inlined_call_operand.hbm [shape: f32[32,128], index: 0, kind: input, shape index: {}]
  %s1 = inlined_call_operand.hbm [shape: bf16[128,128], index: 1, kind: input, shape index: {}]
  %s2 = inlined_call_operand.hbm [shape: bf16[2,128,128], index: 2, kind: input, shape index: {}]
  %s3 = inlined_call_operand.vmem [shape: f32[1,128], index: 3, kind: input, shape index: {}]
  %s4 = inlined_call_operand.vmem [shape: f32[1,128], index: 4, kind: input, shape index: {}]
  %s5 = inlined_call_operand.hbm [shape: bf16[3,128,128], index: 5, kind: input, shape index: {}]
  %s6 = inlined_call_operand.vmem [shape: f32[1,128], index: 6, kind: input, shape index: {}]
  %s7 = inlined_call_operand.vmem [shape: f32[1,128], index: 7, kind: input, shape index: {}]
  %s8 = inlined_call_operand.hbm [shape: f32[32,128], index: 8, kind: output, shape index: {}]
  %s9 = sld [smem:[#allocation0]]
  $region58: #{tpu_custom_call.1} parent=0
    _
  %s11 = ssub.s32 1, %s9
  %s12 = scalar_select 0, %s11, %s9
  $region1: #{tpu_custom_call.1} parent=0
    #allocation2 [shape = 'u8[16384]{0}', space=vmem, size = 0x4000, scoped, tag = 'input window, operand 0, single buffered']
    #allocation3 [shape = 's32[1]{0}', space=sflag, size = 0x4, scoped, tag = 'scoped memory for tpu_custom_call.1']
    #allocation4 [shape = 's32[1]{0}', space=sflag, size = 0x4, scoped, tag = 'scoped memory for tpu_custom_call.1']
    #allocation5 [shape = 'u8[32768]{0}', space=vmem, size = 0x8000, scoped, tag = 'input window, operand 1, single buffered']
    #allocation6 [shape = 's32[1]{0}', space=sflag, size = 0x4, scoped, tag = 'scoped memory for tpu_custom_call.1']
    #allocation7 [shape = 'u8[65536]{0}', space=vmem, size = 0x10000, scoped, tag = 'input window, operand 2, single buffered']
    #allocation8 [shape = 'u8[98304]{0}', space=vmem, size = 0x18000, scoped, tag = 'input window, operand 5, single buffered']
    #allocation9 [shape = 's32[1]{0}', space=sflag, size = 0x4, scoped, tag = 'scoped memory for tpu_custom_call.1']
    #allocation10 [shape = 'u8[16384]{0}', space=vmem, size = 0x4000, scoped, tag = 'output window, operand 0, single buffered']
    %13 = vsyncpa [#allocation3], 0
    %14 = vsyncpa [#allocation6], 0
    %15 = vsyncpa [#allocation9], 0
    %16 = vsyncpa [#allocation4], 0
    // Predicated region
    $region2: #{tpu_custom_call.1} parent=1 // pred_check
      _
    $region3: #{tpu_custom_call.1} parent=1 // pred_check_branch
      %18 = sbr.rel (0) target = $region5
    $region4: #{tpu_custom_call.1} parent=1 // pred_region
      %s20 = ssub.s32 512, 512
      %21 = vsyncadd [#allocation3], %s20
      %s22 = sshll.u32 [#allocation2], 4
      %s23 = int_to_ptr.vmem [resolvable:$true] %s22
      %28 = dma.hbm_to_vmem [thread:$0]  %s0, 512, %s23, [#allocation3], 128, 128, 8
    $region5: #{tpu_custom_call.1} parent=1 // pred_fallthru
      _
    // Predicated region
    $region6: #{tpu_custom_call.1} parent=1 // pred_check
      _
    $region7: #{tpu_custom_call.1} parent=1 // pred_check_branch
      %30 = sbr.rel (0) target = $region9
    $region8: #{tpu_custom_call.1} parent=1 // pred_region
      %s32 = ssub.s32 1024, 1024
      %33 = vsyncadd [#allocation6], %s32
      %s34 = sshll.u32 [#allocation5], 4
      %s35 = int_to_ptr.vmem [resolvable:$true] %s34
      %40 = dma.hbm_to_vmem [thread:$0]  %s1, 1024, %s35, [#allocation6], 64, 64, 4
    $region9: #{tpu_custom_call.1} parent=1 // pred_fallthru
      _
    // Predicated region
    $region10: #{tpu_custom_call.1} parent=1 // pred_check
      _
    $region11: #{tpu_custom_call.1} parent=1 // pred_check_branch
      %42 = sbr.rel (0) target = $region13
    $region12: #{tpu_custom_call.1} parent=1 // pred_region
      %s44 = ssub.s32 2048, 2048
      %45 = vsyncadd [#allocation6], %s44
      %s46 = sshll.u32 [#allocation7], 4
      %s47 = int_to_ptr.vmem [resolvable:$true] %s46
      %52 = dma.hbm_to_vmem [thread:$0]  %s2, 2048, %s47, [#allocation6], 64, 64, 4
    $region13: #{tpu_custom_call.1} parent=1 // pred_fallthru
      _
    // Predicated region
    $region14: #{tpu_custom_call.1} parent=1 // pred_check
      _
    $region15: #{tpu_custom_call.1} parent=1 // pred_check_branch
      %54 = sbr.rel (0) target = $region17
    $region16: #{tpu_custom_call.1} parent=1 // pred_region
      _
    $region17: #{tpu_custom_call.1} parent=1 // pred_fallthru
      _
    // Predicated region
    $region18: #{tpu_custom_call.1} parent=1 // pred_check
      _
    $region19: #{tpu_custom_call.1} parent=1 // pred_check_branch
      %56 = sbr.rel (0) target = $region21
    $region20: #{tpu_custom_call.1} parent=1 // pred_region
      _
    $region21: #{tpu_custom_call.1} parent=1 // pred_fallthru
      _
    // Predicated region
    $region22: #{tpu_custom_call.1} parent=1 // pred_check
      _
    $region23: #{tpu_custom_call.1} parent=1 // pred_check_branch
      %58 = sbr.rel (0) target = $region25
    $region24: #{tpu_custom_call.1} parent=1 // pred_region
      %s60 = ssub.s32 3072, 3072
      %61 = vsyncadd [#allocation9], %s60
      %s62 = sshll.u32 [#allocation8], 4
      %s63 = int_to_ptr.vmem [resolvable:$true] %s62
      %68 = dma.hbm_to_vmem [thread:$0]  %s5, 3072, %s63, [#allocation9], 64, 64, 4
    $region25: #{tpu_custom_call.1} parent=1 // pred_fallthru
      _
    // Predicated region
    $region26: #{tpu_custom_call.1} parent=1 // pred_check
      _
    $region27: #{tpu_custom_call.1} parent=1 // pred_check_branch
      %70 = sbr.rel (0) target = $region29
    $region28: #{tpu_custom_call.1} parent=1 // pred_region
      _
    $region29: #{tpu_custom_call.1} parent=1 // pred_fallthru
      _
    // Predicated region
    $region30: #{tpu_custom_call.1} parent=1 // pred_check
      _
    $region31: #{tpu_custom_call.1} parent=1 // pred_check_branch
      %72 = sbr.rel (0) target = $region33
    $region32: #{tpu_custom_call.1} parent=1 // pred_region
      _
    $region33: #{tpu_custom_call.1} parent=1 // pred_fallthru
      _
    // Predicated region
    $region34: #{tpu_custom_call.1} parent=1 // pred_check
      _
    $region35: #{tpu_custom_call.1} parent=1 // pred_check_branch
      %74 = sbr.rel (0) target = $region37
    $region36: #{tpu_custom_call.1} parent=1 // pred_region
      %75 = dma.done [#allocation3], 512
    $region37: #{tpu_custom_call.1} parent=1 // pred_fallthru
      _
    // Predicated region
    $region38: #{tpu_custom_call.1} parent=1 // pred_check
      _
    $region39: #{tpu_custom_call.1} parent=1 // pred_check_branch
      %77 = sbr.rel (0) target = $region41
    $region40: #{tpu_custom_call.1} parent=1 // pred_region
      %78 = dma.done [#allocation6], 1024
    $region41: #{tpu_custom_call.1} parent=1 // pred_fallthru
      _
    // Predicated region
    $region42: #{tpu_custom_call.1} parent=1 // pred_check
      _
    $region43: #{tpu_custom_call.1} parent=1 // pred_check_branch
      %80 = sbr.rel (0) target = $region45
    $region44: #{tpu_custom_call.1} parent=1 // pred_region
      %81 = dma.done [#allocation6], 2048
    $region45: #{tpu_custom_call.1} parent=1 // pred_fallthru
      _
    // Predicated region
    $region46: #{tpu_custom_call.1} parent=1 // pred_check
      _
    $region47: #{tpu_custom_call.1} parent=1 // pred_check_branch
      %83 = sbr.rel (0) target = $region49
    $region48: #{tpu_custom_call.1} parent=1 // pred_region
      %84 = dma.done [#allocation9], 3072
    $region49: #{tpu_custom_call.1} parent=1 // pred_fallthru
      _
    %v86 = vld [vmem:[#allocation2] sm:$0xff]
    %v87 = vld [vmem:[#allocation2 + $0x8] sm:$0xff]
    %v88 = vld [vmem:[#allocation2 + $0x10] sm:$0xff]
    %v89 = vld [vmem:[#allocation2 + $0x18] sm:$0xff]
    %v90 = vpack.c.bf16 %v87, %v86
    %v91 = vpack.c.bf16 %v89, %v88
    %v92 = vlaneseq
    %v93 = vshrl.u32 %v92, 7
    %v94 = vadd.s32 %v93, 8
    %v95 = vadd.s32 %v93, 16
    %v96 = vadd.s32 %v93, 24
    %vm97 = vcmp.lt.s32.totalorder %v93, 0
    %v98 = vsub.s32 0, %v93
    %v99 = vsel %vm97, %v98, %v93
    %v100 = vshrl.u32 %v99, 4
    %v101 = vand.u32 %v99, 15
    %v102 = vsub.s32 0, %v101
    %v103 = vsel %vm97, %v102, %v101
    %vm104 = vcmp.lt.s32.totalorder %v94, 0
    %v105 = vsub.s32 0, %v94
    %v106 = vsel %vm104, %v105, %v94
    %v107 = vshrl.u32 %v106, 4
    %v108 = vand.u32 %v106, 15
    %v109 = vsub.s32 0, %v108
    %v110 = vsel %vm104, %v109, %v108
    %vm111 = vcmp.lt.s32.totalorder %v95, 0
    %v112 = vsub.s32 0, %v95
    %v113 = vsel %vm111, %v112, %v95
    %v114 = vshrl.u32 %v113, 4
    %v115 = vand.u32 %v113, 15
    %v116 = vsub.s32 0, %v115
    %v117 = vsel %vm111, %v116, %v115
    %vm118 = vcmp.lt.s32.totalorder %v96, 0
    %v119 = vsub.s32 0, %v96
    %v120 = vsel %vm118, %v119, %v96
    %v121 = vshrl.u32 %v120, 4
    %v122 = vand.u32 %v120, 15
    %v123 = vsub.s32 0, %v122
    %v124 = vsel %vm118, %v123, %v122
    %vm125 = vcmp.ne.s32.totalorder %v103, 0
    %vm126 = vcmp.ne.s32.totalorder %v110, 0
    %vm127 = vcmp.ne.s32.totalorder %v117, 0
    %vm128 = vcmp.ne.s32.totalorder %v124, 0
    %vm129 = vcmp.lt.s32.totalorder %v103, 0
    %vm130 = vcmp.lt.s32.totalorder %v110, 0
    %vm131 = vcmp.lt.s32.totalorder %v117, 0
    %vm132 = vcmp.lt.s32.totalorder %v124, 0
    %vm133 = vmand %vm129, %vm125
    %vm134 = vmand %vm130, %vm126
    %vm135 = vmand %vm131, %vm127
    %vm136 = vmand %vm132, %vm128
    %v137 = vadd.s32 %v103, 16
    %v138 = vadd.s32 %v110, 16
    %v139 = vadd.s32 %v117, 16
    %v140 = vadd.s32 %v124, 16
    %v141 = vsel %vm133, %v137, %v103
    %v142 = vsel %vm134, %v138, %v110
    %v143 = vsel %vm135, %v139, %v117
    %v144 = vsel %vm136, %v140, %v124
    %vm145 = vcmp.eq.s32.totalorder %v141, 0
    %vm146 = vcmp.eq.s32.totalorder %v142, 0
    %vm147 = vcmp.eq.s32.totalorder %v143, 0
    %vm148 = vcmp.eq.s32.totalorder %v144, 0
    %vm149 = vcmp.eq.s32.totalorder %v141, 15
    %vm150 = vcmp.eq.s32.totalorder %v142, 15
    %vm151 = vcmp.eq.s32.totalorder %v143, 15
    %vm152 = vcmp.eq.s32.totalorder %v144, 15
    %v153 = vld [vmem:[#allocation5] sm:$0xf]
    %v154 = vld [vmem:[#allocation5 + $0x4] sm:$0xf]
    %v155 = vld [vmem:[#allocation5 + $0x8] sm:$0xf]
    %v156 = vld [vmem:[#allocation5 + $0xc] sm:$0xf]
    %v157 = vld [vmem:[#allocation5 + $0x10] sm:$0xf]
    %v158 = vld [vmem:[#allocation5 + $0x14] sm:$0xf]
    %v159 = vld [vmem:[#allocation5 + $0x18] sm:$0xf]
    %v160 = vld [vmem:[#allocation5 + $0x1c] sm:$0xf]
    %v161 = vld [vmem:[#allocation5 + $0x20] sm:$0xf]
    %v162 = vld [vmem:[#allocation5 + $0x24] sm:$0xf]
    %v163 = vld [vmem:[#allocation5 + $0x28] sm:$0xf]
    %v164 = vld [vmem:[#allocation5 + $0x2c] sm:$0xf]
    %v165 = vld [vmem:[#allocation5 + $0x30] sm:$0xf]
    %v166 = vld [vmem:[#allocation5 + $0x34] sm:$0xf]
    %v167 = vld [vmem:[#allocation5 + $0x38] sm:$0xf]
    %v168 = vld [vmem:[#allocation5 + $0x3c] sm:$0xf]
    %v169 = vrot.slane %v86, 7
    %v170 = vrot.slane %v87, 7
    %v171 = vrot.slane %v88, 7
    %v172 = vrot.slane %v89, 7
    %vm173 = vcmp.lt.s32.totalorder %v93, 1
    %v174 = vsel %vm173, %v171, %v172
    %v175 = vsel %vm173, %v170, %v171
    %v176 = vsel %vm173, %v169, %v170
    %v177 = vsel %vm173, %v172, %v169
    %v178 = vsel %vm145, 1, 0
    %v179 = vsel %vm146, 1, 0
    %v180 = vsel %vm147, 1, 0
    %v181 = vsel %vm148, 1, 0
    %vm182 = vcmp.eq.s32.totalorder %v178, 1
    %vm183 = vcmp.eq.s32.totalorder %v179, 1
    %vm184 = vcmp.eq.s32.totalorder %v180, 1
    %vm185 = vcmp.eq.s32.totalorder %v181, 1
    %v186 = vsel %vm182, 0.0, %v177
    %v187 = vsel %vm183, 0.0, %v176
    %v188 = vsel %vm184, 0.0, %v175
    %v189 = vsel %vm185, 0.0, %v174
    %v190 = vrot.slane %v86, 1
    %v191 = vrot.slane %v87, 1
    %v192 = vrot.slane %v88, 1
    %v193 = vrot.slane %v89, 1
    %vm194 = vcmp.lt.s32.totalorder %v93, 7
    %v195 = vsel %vm194, %v192, %v193
    %v196 = vsel %vm194, %v191, %v192
    %v197 = vsel %vm194, %v190, %v191
    %v198 = vsel %vm194, %v193, %v190
    %v199 = vsel %vm149, 1, 0
    %v200 = vsel %vm150, 1, 0
    %v201 = vsel %vm151, 1, 0
    %v202 = vsel %vm152, 1, 0
    %vm203 = vcmp.eq.s32.totalorder %v199, 1
    %vm204 = vcmp.eq.s32.totalorder %v200, 1
    %vm205 = vcmp.eq.s32.totalorder %v201, 1
    %vm206 = vcmp.eq.s32.totalorder %v202, 1
    %v207 = vsel %vm203, 0.0, %v197
    %v208 = vsel %vm204, 0.0, %v196
    %v209 = vsel %vm205, 0.0, %v195
    %v210 = vsel %vm206, 0.0, %v198
    %v211 = vpack.c.bf16 %v187, %v186
    %v212 = vpack.c.bf16 %v189, %v188
    %v213 = vpack.c.bf16 %v208, %v207
    %v214 = vpack.c.bf16 %v210, %v209
    %v215 = vld [vmem:[#allocation7] sm:$0xf]
    %v216 = vld [vmem:[#allocation7 + $0x4] sm:$0xf]
    %v217 = vld [vmem:[#allocation7 + $0x8] sm:$0xf]
    %v218 = vld [vmem:[#allocation7 + $0xc] sm:$0xf]
    %v219 = vld [vmem:[#allocation7 + $0x10] sm:$0xf]
    %v220 = vld [vmem:[#allocation7 + $0x14] sm:$0xf]
    %v221 = vld [vmem:[#allocation7 + $0x18] sm:$0xf]
    %v222 = vld [vmem:[#allocation7 + $0x1c] sm:$0xf]
    %v223 = vld [vmem:[#allocation7 + $0x20] sm:$0xf]
    %v224 = vld [vmem:[#allocation7 + $0x24] sm:$0xf]
    %v225 = vld [vmem:[#allocation7 + $0x28] sm:$0xf]
    %v226 = vld [vmem:[#allocation7 + $0x2c] sm:$0xf]
    %v227 = vld [vmem:[#allocation7 + $0x30] sm:$0xf]
    %v228 = vld [vmem:[#allocation7 + $0x34] sm:$0xf]
    %v229 = vld [vmem:[#allocation7 + $0x38] sm:$0xf]
    %v230 = vld [vmem:[#allocation7 + $0x3c] sm:$0xf]
    %v247 = vunpack.c.l.b16 %v215
    %v248 = vunpack.c.l.b16 %v216
    %v249 = vunpack.c.l.b16 %v217
    %v250 = vunpack.c.l.b16 %v218
    %v251 = vunpack.c.l.b16 %v219
    %v252 = vunpack.c.l.b16 %v220
    %v253 = vunpack.c.l.b16 %v221
    %v254 = vunpack.c.l.b16 %v222
    %v255 = vunpack.c.l.b16 %v223
    %v256 = vunpack.c.l.b16 %v224
    %v257 = vunpack.c.l.b16 %v225
    %v258 = vunpack.c.l.b16 %v226
    %v259 = vunpack.c.l.b16 %v227
    %v260 = vunpack.c.l.b16 %v228
    %v261 = vunpack.c.l.b16 %v229
    %v262 = vunpack.c.l.b16 %v230
    %v263 = vpack.c.b16 %v248, %v247
    %v264 = vpack.c.b16 %v250, %v249
    %v265 = vpack.c.b16 %v252, %v251
    %v266 = vpack.c.b16 %v254, %v253
    %v267 = vpack.c.b16 %v256, %v255
    %v268 = vpack.c.b16 %v258, %v257
    %v269 = vpack.c.b16 %v260, %v259
    %v270 = vpack.c.b16 %v262, %v261
    %279 = vmatprep.subr.bf16.mxu0 0
    %280 = vmatpush1.bf16.msra.mxu0 %v263
    %281 = vmatprep.subr.bf16.mxu0 0
    %282 = vmatpush1.bf16.msra.mxu0 %v264
    %283 = vmatprep.subr.bf16.mxu0 0
    %284 = vmatpush1.bf16.msra.mxu0 %v265
    %285 = vmatprep.subr.bf16.mxu0 0
    %286 = vmatpush1.bf16.msra.mxu0 %v266
    %287 = vmatprep.subr.bf16.mxu0 0
    %288 = vmatpush1.bf16.msra.mxu0 %v267
    %289 = vmatprep.subr.bf16.mxu0 0
    %290 = vmatpush1.bf16.msra.mxu0 %v268
    %291 = vmatprep.subr.bf16.mxu0 0
    %292 = vmatpush1.bf16.msra.mxu0 %v269
    %293 = vmatprep.subr.bf16.mxu0 0
    %294 = vmatpush1.bf16.msra.mxu0 %v270
    %295 = vmatprep.subr.bf16.mxu0 0
    %296 = vmatpush1.bf16.msra.mxu0 0
    %297 = vmatprep.subr.bf16.mxu0 0
    %298 = vmatpush1.bf16.msra.mxu0 0
    %299 = vmatprep.subr.bf16.mxu0 0
    %300 = vmatpush1.bf16.msra.mxu0 0
    %301 = vmatprep.subr.bf16.mxu0 0
    %302 = vmatpush1.bf16.msra.mxu0 0
    %303 = vmatprep.subr.bf16.mxu0 0
    %304 = vmatpush1.bf16.msra.mxu0 0
    %305 = vmatprep.subr.bf16.mxu0 0
    %306 = vmatpush1.bf16.msra.mxu0 0
    %307 = vmatprep.subr.bf16.mxu0 0
    %308 = vmatpush1.bf16.msra.mxu0 0
    %309 = vmatprep.subr.bf16.mxu0 0
    %310 = vmatpush1.bf16.msra.mxu0 0
    %311 = vmatprep.mubr.bf16.mxu0 0
    %312 = vmatmul.mubr.bf16.gmra.mrb[0].mxu0 %v211
    %v313 = vpop.f32.mrb[0].mxu0
    %v314 = vadd.f32 0.0, %v313
    %v315 = vpop.f32.mrb[0].mxu0
    %v316 = vpop.f32.mrb[0].mxu0
    %v317 = vadd.f32 0.0, %v316
    %v318 = vpop.f32.mrb[0].mxu0
    %319 = vmatprep.mubr.bf16.mxu0 0
    %320 = vmatmul.mubr.bf16.gmra.mrb[0].mxu0 %v212
    %v321 = vpop.f32.mrb[0].mxu0
    %v322 = vadd.f32 0.0, %v321
    %v323 = vpop.f32.mrb[0].mxu0
    %v324 = vpop.f32.mrb[0].mxu0
    %v325 = vadd.f32 0.0, %v324
    %v326 = vpop.f32.mrb[0].mxu0
    %327 = vdwg.mxu0
    %v344 = vunpack.c.l.b16 %v153
    %v345 = vunpack.c.l.b16 %v154
    %v346 = vunpack.c.l.b16 %v155
    %v347 = vunpack.c.l.b16 %v156
    %v348 = vunpack.c.l.b16 %v157
    %v349 = vunpack.c.l.b16 %v158
    %v350 = vunpack.c.l.b16 %v159
    %v351 = vunpack.c.l.b16 %v160
    %v352 = vunpack.c.l.b16 %v161
    %v353 = vunpack.c.l.b16 %v162
    %v354 = vunpack.c.l.b16 %v163
    %v355 = vunpack.c.l.b16 %v164
    %v356 = vunpack.c.l.b16 %v165
    %v357 = vunpack.c.l.b16 %v166
    %v358 = vunpack.c.l.b16 %v167
    %v359 = vunpack.c.l.b16 %v168
    %v360 = vpack.c.b16 %v345, %v344
    %v361 = vpack.c.b16 %v347, %v346
    %v362 = vpack.c.b16 %v349, %v348
    %v363 = vpack.c.b16 %v351, %v350
    %v364 = vpack.c.b16 %v353, %v352
    %v365 = vpack.c.b16 %v355, %v354
    %v366 = vpack.c.b16 %v357, %v356
    %v367 = vpack.c.b16 %v359, %v358
    %376 = vmatprep.subr.bf16.mxu0 0
    %377 = vmatpush1.bf16.msra.mxu0 %v360
    %378 = vmatprep.subr.bf16.mxu0 0
    %379 = vmatpush1.bf16.msra.mxu0 %v361
    %380 = vmatprep.subr.bf16.mxu0 0
    %381 = vmatpush1.bf16.msra.mxu0 %v362
    %382 = vmatprep.subr.bf16.mxu0 0
    %383 = vmatpush1.bf16.msra.mxu0 %v363
    %384 = vmatprep.subr.bf16.mxu0 0
    %385 = vmatpush1.bf16.msra.mxu0 %v364
    %386 = vmatprep.subr.bf16.mxu0 0
    %387 = vmatpush1.bf16.msra.mxu0 %v365
    %388 = vmatprep.subr.bf16.mxu0 0
    %389 = vmatpush1.bf16.msra.mxu0 %v366
    %390 = vmatprep.subr.bf16.mxu0 0
    %391 = vmatpush1.bf16.msra.mxu0 %v367
    %392 = vmatprep.subr.bf16.mxu0 0
    %393 = vmatpush1.bf16.msra.mxu0 0
    %394 = vmatprep.subr.bf16.mxu0 0
    %395 = vmatpush1.bf16.msra.mxu0 0
    %396 = vmatprep.subr.bf16.mxu0 0
    %397 = vmatpush1.bf16.msra.mxu0 0
    %398 = vmatprep.subr.bf16.mxu0 0
    %399 = vmatpush1.bf16.msra.mxu0 0
    %400 = vmatprep.subr.bf16.mxu0 0
    %401 = vmatpush1.bf16.msra.mxu0 0
    %402 = vmatprep.subr.bf16.mxu0 0
    %403 = vmatpush1.bf16.msra.mxu0 0
    %404 = vmatprep.subr.bf16.mxu0 0
    %405 = vmatpush1.bf16.msra.mxu0 0
    %406 = vmatprep.subr.bf16.mxu0 0
    %407 = vmatpush1.bf16.msra.mxu0 0
    %408 = vmatprep.mubr.bf16.mxu0 0
    %409 = vmatmul.mubr.bf16.gmra.mrb[0].mxu0 %v90
    %v410 = vpop.f32.mrb[0].mxu0
    %v411 = vadd.f32 %v314, %v410
    %v412 = vpop.f32.mrb[0].mxu0
    %v413 = vpop.f32.mrb[0].mxu0
    %v414 = vadd.f32 %v317, %v413
    %v415 = vpop.f32.mrb[0].mxu0
    %416 = vmatprep.mubr.bf16.mxu0 0
    %417 = vmatmul.mubr.bf16.gmra.mrb[0].mxu0 %v91
    %v418 = vpop.f32.mrb[0].mxu0
    %v419 = vadd.f32 %v322, %v418
    %v420 = vpop.f32.mrb[0].mxu0
    %v421 = vpop.f32.mrb[0].mxu0
    %v422 = vadd.f32 %v325, %v421
    %v423 = vpop.f32.mrb[0].mxu0
    %424 = vdwg.mxu0
    %s425 = scalar_lea.vmem [#allocation7], 64
    %v426 = vld [vmem:[%s425] sm:$0xf]
    %v427 = vld [vmem:[%s425 + $0x4] sm:$0xf]
    %v428 = vld [vmem:[%s425 + $0x8] sm:$0xf]
    %v429 = vld [vmem:[%s425 + $0xc] sm:$0xf]
    %v430 = vld [vmem:[%s425 + $0x10] sm:$0xf]
    %v431 = vld [vmem:[%s425 + $0x14] sm:$0xf]
    %v432 = vld [vmem:[%s425 + $0x18] sm:$0xf]
    %v433 = vld [vmem:[%s425 + $0x1c] sm:$0xf]
    %v434 = vld [vmem:[%s425 + $0x20] sm:$0xf]
    %v435 = vld [vmem:[%s425 + $0x24] sm:$0xf]
    %v436 = vld [vmem:[%s425 + $0x28] sm:$0xf]
    %v437 = vld [vmem:[%s425 + $0x2c] sm:$0xf]
    %v438 = vld [vmem:[%s425 + $0x30] sm:$0xf]
    %v439 = vld [vmem:[%s425 + $0x34] sm:$0xf]
    %v440 = vld [vmem:[%s425 + $0x38] sm:$0xf]
    %v441 = vld [vmem:[%s425 + $0x3c] sm:$0xf]
    %v458 = vunpack.c.l.b16 %v426
    %v459 = vunpack.c.l.b16 %v427
    %v460 = vunpack.c.l.b16 %v428
    %v461 = vunpack.c.l.b16 %v429
    %v462 = vunpack.c.l.b16 %v430
    %v463 = vunpack.c.l.b16 %v431
    %v464 = vunpack.c.l.b16 %v432
    %v465 = vunpack.c.l.b16 %v433
    %v466 = vunpack.c.l.b16 %v434
    %v467 = vunpack.c.l.b16 %v435
    %v468 = vunpack.c.l.b16 %v436
    %v469 = vunpack.c.l.b16 %v437
    %v470 = vunpack.c.l.b16 %v438
    %v471 = vunpack.c.l.b16 %v439
    %v472 = vunpack.c.l.b16 %v440
    %v473 = vunpack.c.l.b16 %v441
    %v474 = vpack.c.b16 %v459, %v458
    %v475 = vpack.c.b16 %v461, %v460
    %v476 = vpack.c.b16 %v463, %v462
    %v477 = vpack.c.b16 %v465, %v464
    %v478 = vpack.c.b16 %v467, %v466
    %v479 = vpack.c.b16 %v469, %v468
    %v480 = vpack.c.b16 %v471, %v470
    %v481 = vpack.c.b16 %v473, %v472
    %490 = vmatprep.subr.bf16.mxu0 0
    %491 = vmatpush1.bf16.msra.mxu0 %v474
    %492 = vmatprep.subr.bf16.mxu0 0
    %493 = vmatpush1.bf16.msra.mxu0 %v475
    %494 = vmatprep.subr.bf16.mxu0 0
    %495 = vmatpush1.bf16.msra.mxu0 %v476
    %496 = vmatprep.subr.bf16.mxu0 0
    %497 = vmatpush1.bf16.msra.mxu0 %v477
    %498 = vmatprep.subr.bf16.mxu0 0
    %499 = vmatpush1.bf16.msra.mxu0 %v478
    %500 = vmatprep.subr.bf16.mxu0 0
    %501 = vmatpush1.bf16.msra.mxu0 %v479
    %502 = vmatprep.subr.bf16.mxu0 0
    %503 = vmatpush1.bf16.msra.mxu0 %v480
    %504 = vmatprep.subr.bf16.mxu0 0
    %505 = vmatpush1.bf16.msra.mxu0 %v481
    %506 = vmatprep.subr.bf16.mxu0 0
    %507 = vmatpush1.bf16.msra.mxu0 0
    %508 = vmatprep.subr.bf16.mxu0 0
    %509 = vmatpush1.bf16.msra.mxu0 0
    %510 = vmatprep.subr.bf16.mxu0 0
    %511 = vmatpush1.bf16.msra.mxu0 0
    %512 = vmatprep.subr.bf16.mxu0 0
    %513 = vmatpush1.bf16.msra.mxu0 0
    %514 = vmatprep.subr.bf16.mxu0 0
    %515 = vmatpush1.bf16.msra.mxu0 0
    %516 = vmatprep.subr.bf16.mxu0 0
    %517 = vmatpush1.bf16.msra.mxu0 0
    %518 = vmatprep.subr.bf16.mxu0 0
    %519 = vmatpush1.bf16.msra.mxu0 0
    %520 = vmatprep.subr.bf16.mxu0 0
    %521 = vmatpush1.bf16.msra.mxu0 0
    %522 = vmatprep.mubr.bf16.mxu0 0
    %523 = vmatmul.mubr.bf16.gmra.mrb[0].mxu0 %v213
    %v524 = vpop.f32.mrb[0].mxu0
    %v525 = vadd.f32 0.0, %v524
    %v526 = vpop.f32.mrb[0].mxu0
    %v527 = vpop.f32.mrb[0].mxu0
    %v528 = vadd.f32 0.0, %v527
    %v529 = vpop.f32.mrb[0].mxu0
    %530 = vmatprep.mubr.bf16.mxu0 0
    %531 = vmatmul.mubr.bf16.gmra.mrb[0].mxu0 %v214
    %v532 = vpop.f32.mrb[0].mxu0
    %v533 = vadd.f32 0.0, %v532
    %v534 = vpop.f32.mrb[0].mxu0
    %v535 = vpop.f32.mrb[0].mxu0
    %v536 = vadd.f32 0.0, %v535
    %v537 = vpop.f32.mrb[0].mxu0
    %538 = vdwg.mxu0
    %v539 = vadd.f32 %v411, %v525
    %v540 = vadd.f32 %v414, %v528
    %v541 = vadd.f32 %v419, %v533
    %v542 = vadd.f32 %v422, %v536
    %v543 = vld [vmem:[%s3] sm:$0x1]
    %v544 = vld [vmem:[%s4] sm:$0x1]
    %v545 = vadd.f32 %v539, %v540
    %v546 = vadd.f32 %v545, %v541
    %v547 = vadd.f32 %v546, %v542
    %v548 = vrot.slane %v547, 4
    %v549 = vadd.f32 %v547, %v548
    %v550 = vrot.slane %v549, 2
    %v551 = vadd.f32 %v549, %v550
    %v552 = vrot.slane %v551, 1
    %v553 = vadd.f32 %v551, %v552
    %v554 = vmul.f32 %v539, %v539
    %v555 = vmul.f32 %v540, %v540
    %v556 = vmul.f32 %v541, %v541
    %v557 = vmul.f32 %v542, %v542
    %v558 = vadd.f32 %v554, %v555
    %v559 = vadd.f32 %v558, %v556
    %v560 = vadd.f32 %v559, %v557
    %v561 = vrot.slane %v560, 4
    %v562 = vadd.f32 %v560, %v561
    %v563 = vrot.slane %v562, 2
    %v564 = vadd.f32 %v562, %v563
    %v565 = vrot.slane %v564, 1
    %v566 = vadd.f32 %v564, %v565
    %vm567 = vcmask 1040384
    %v568 = vsel %vm567, %v553, %v566
    %569 = vrot.lane.b32.xlu0 %v568, 8
    %v570 = vpop.permute.xlu0 %569
    %v571 = vadd.f32 %v568, %v570
    %572 = vrot.lane.b32.xlu0 %v571, 16
    %v573 = vpop.permute.xlu0 %572
    %v574 = vadd.f32 %v571, %v573
    %575 = vrot.lane.b32.xlu0 %v574, 32
    %v576 = vpop.permute.xlu0 %575
    %v577 = vadd.f32 %v574, %v576
    %578 = vrot.lane.b32.xlu0 %v577, 64
    %v579 = vpop.permute.xlu0 %578
    %v580 = vadd.f32 %v577, %v579
    %v581 = vmul.f32 %v580, 0.001953125
    %v582 = vmul.f32 %v581, %v581
    %v584 = vrot.slane %v582, 7
    %v586 = vsub.f32 %v581, %v584
    %v587 = vadd.f32 %v586, 1e-05
    %v588 = vrsqrt.pop %v587
    %v589 = vlaneseq
    %v590 = vshrl.u32 %v589, 7
    %v591 = vsub.s32 0, %v590
    %v592 = vrot.slane %v581, %v591
    %v593 = vsub.f32 %v539, %v592
    %v594 = vsub.f32 %v540, %v592
    %v595 = vsub.f32 %v541, %v592
    %v596 = vsub.f32 %v542, %v592
    %v598 = vlaneseq
    %v599 = vshrl.u32 %v598, 7
    %v600 = vsub.s32 0, %v599
    %v601 = vrot.slane %v543, %v600
    %v603 = vmul.f32 %v588, %v601
    %v604 = vlaneseq
    %v605 = vshrl.u32 %v604, 7
    %v606 = vsub.s32 1, %v605
    %v607 = vrot.slane %v603, %v606
    %v608 = vmul.f32 %v593, %v607
    %v609 = vmul.f32 %v594, %v607
    %v610 = vmul.f32 %v595, %v607
    %v611 = vmul.f32 %v596, %v607
    %v613 = vlaneseq
    %v614 = vshrl.u32 %v613, 7
    %v615 = vsub.s32 0, %v614
    %v616 = vrot.slane %v544, %v615
    %v618 = vadd.f32 %v608, %v616
    %v619 = vadd.f32 %v609, %v616
    %v620 = vadd.f32 %v610, %v616
    %v621 = vadd.f32 %v611, %v616
    %vm622 = vcmp.ge.f32.partialorder %v618, 0.0
    %vm623 = vcmp.ge.f32.partialorder %v619, 0.0
    %vm624 = vcmp.ge.f32.partialorder %v620, 0.0
    %vm625 = vcmp.ge.f32.partialorder %v621, 0.0
    %v626 = vmul.f32 %v618, 0.2
    %v627 = vmul.f32 %v619, 0.2
    %v628 = vmul.f32 %v620, 0.2
    %v629 = vmul.f32 %v621, 0.2
    %v630 = vsel %vm622, %v618, %v626
    %v631 = vsel %vm623, %v619, %v627
    %v632 = vsel %vm624, %v620, %v628
    %v633 = vsel %vm625, %v621, %v629
    %v634 = vpack.c.bf16 %v631, %v630
    %v635 = vpack.c.bf16 %v633, %v632
    %s636 = scalar_lea.vmem [#allocation8], 64
    %v637 = vld [vmem:[%s636] sm:$0xf]
    %v638 = vld [vmem:[%s636 + $0x4] sm:$0xf]
    %v639 = vld [vmem:[%s636 + $0x8] sm:$0xf]
    %v640 = vld [vmem:[%s636 + $0xc] sm:$0xf]
    %v641 = vld [vmem:[%s636 + $0x10] sm:$0xf]
    %v642 = vld [vmem:[%s636 + $0x14] sm:$0xf]
    %v643 = vld [vmem:[%s636 + $0x18] sm:$0xf]
    %v644 = vld [vmem:[%s636 + $0x1c] sm:$0xf]
    %v645 = vld [vmem:[%s636 + $0x20] sm:$0xf]
    %v646 = vld [vmem:[%s636 + $0x24] sm:$0xf]
    %v647 = vld [vmem:[%s636 + $0x28] sm:$0xf]
    %v648 = vld [vmem:[%s636 + $0x2c] sm:$0xf]
    %v649 = vld [vmem:[%s636 + $0x30] sm:$0xf]
    %v650 = vld [vmem:[%s636 + $0x34] sm:$0xf]
    %v651 = vld [vmem:[%s636 + $0x38] sm:$0xf]
    %v652 = vld [vmem:[%s636 + $0x3c] sm:$0xf]
    %v653 = vrot.slane %v630, 7
    %v654 = vrot.slane %v631, 7
    %v655 = vrot.slane %v632, 7
    %v656 = vrot.slane %v633, 7
    %v657 = vsel %vm173, %v655, %v656
    %v658 = vsel %vm173, %v654, %v655
    %v659 = vsel %vm173, %v653, %v654
    %v660 = vsel %vm173, %v656, %v653
    %v661 = vsel %vm182, 0.0, %v660
    %v662 = vsel %vm183, 0.0, %v659
    %v663 = vsel %vm184, 0.0, %v658
    %v664 = vsel %vm185, 0.0, %v657
    %v665 = vrot.slane %v630, 1
    %v666 = vrot.slane %v631, 1
    %v667 = vrot.slane %v632, 1
    %v668 = vrot.slane %v633, 1
    %v669 = vsel %vm194, %v667, %v668
    %v670 = vsel %vm194, %v666, %v667
    %v671 = vsel %vm194, %v665, %v666
    %v672 = vsel %vm194, %v668, %v665
    %v673 = vsel %vm203, 0.0, %v671
    %v674 = vsel %vm204, 0.0, %v670
    %v675 = vsel %vm205, 0.0, %v669
    %v676 = vsel %vm206, 0.0, %v672
    %v677 = vpack.c.bf16 %v662, %v661
    %v678 = vpack.c.bf16 %v664, %v663
    %v679 = vpack.c.bf16 %v674, %v673
    %v680 = vpack.c.bf16 %v676, %v675
    %v681 = vld [vmem:[#allocation8] sm:$0xf]
    %v682 = vld [vmem:[#allocation8 + $0x4] sm:$0xf]
    %v683 = vld [vmem:[#allocation8 + $0x8] sm:$0xf]
    %v684 = vld [vmem:[#allocation8 + $0xc] sm:$0xf]
    %v685 = vld [vmem:[#allocation8 + $0x10] sm:$0xf]
    %v686 = vld [vmem:[#allocation8 + $0x14] sm:$0xf]
    %v687 = vld [vmem:[#allocation8 + $0x18] sm:$0xf]
    %v688 = vld [vmem:[#allocation8 + $0x1c] sm:$0xf]
    %v689 = vld [vmem:[#allocation8 + $0x20] sm:$0xf]
    %v690 = vld [vmem:[#allocation8 + $0x24] sm:$0xf]
    %v691 = vld [vmem:[#allocation8 + $0x28] sm:$0xf]
    %v692 = vld [vmem:[#allocation8 + $0x2c] sm:$0xf]
    %v693 = vld [vmem:[#allocation8 + $0x30] sm:$0xf]
    %v694 = vld [vmem:[#allocation8 + $0x34] sm:$0xf]
    %v695 = vld [vmem:[#allocation8 + $0x38] sm:$0xf]
    %v696 = vld [vmem:[#allocation8 + $0x3c] sm:$0xf]
    %v713 = vunpack.c.l.b16 %v681
    %v714 = vunpack.c.l.b16 %v682
    %v715 = vunpack.c.l.b16 %v683
    %v716 = vunpack.c.l.b16 %v684
    %v717 = vunpack.c.l.b16 %v685
    %v718 = vunpack.c.l.b16 %v686
    %v719 = vunpack.c.l.b16 %v687
    %v720 = vunpack.c.l.b16 %v688
    %v721 = vunpack.c.l.b16 %v689
    %v722 = vunpack.c.l.b16 %v690
    %v723 = vunpack.c.l.b16 %v691
    %v724 = vunpack.c.l.b16 %v692
    %v725 = vunpack.c.l.b16 %v693
    %v726 = vunpack.c.l.b16 %v694
    %v727 = vunpack.c.l.b16 %v695
    %v728 = vunpack.c.l.b16 %v696
    %v729 = vpack.c.b16 %v714, %v713
    %v730 = vpack.c.b16 %v716, %v715
    %v731 = vpack.c.b16 %v718, %v717
    %v732 = vpack.c.b16 %v720, %v719
    %v733 = vpack.c.b16 %v722, %v721
    %v734 = vpack.c.b16 %v724, %v723
    %v735 = vpack.c.b16 %v726, %v725
    %v736 = vpack.c.b16 %v728, %v727
    %745 = vmatprep.subr.bf16.mxu0 0
    %746 = vmatpush1.bf16.msra.mxu0 %v729
    %747 = vmatprep.subr.bf16.mxu0 0
    %748 = vmatpush1.bf16.msra.mxu0 %v730
    %749 = vmatprep.subr.bf16.mxu0 0
    %750 = vmatpush1.bf16.msra.mxu0 %v731
    %751 = vmatprep.subr.bf16.mxu0 0
    %752 = vmatpush1.bf16.msra.mxu0 %v732
    %753 = vmatprep.subr.bf16.mxu0 0
    %754 = vmatpush1.bf16.msra.mxu0 %v733
    %755 = vmatprep.subr.bf16.mxu0 0
    %756 = vmatpush1.bf16.msra.mxu0 %v734
    %757 = vmatprep.subr.bf16.mxu0 0
    %758 = vmatpush1.bf16.msra.mxu0 %v735
    %759 = vmatprep.subr.bf16.mxu0 0
    %760 = vmatpush1.bf16.msra.mxu0 %v736
    %761 = vmatprep.subr.bf16.mxu0 0
    %762 = vmatpush1.bf16.msra.mxu0 0
    %763 = vmatprep.subr.bf16.mxu0 0
    %764 = vmatpush1.bf16.msra.mxu0 0
    %765 = vmatprep.subr.bf16.mxu0 0
    %766 = vmatpush1.bf16.msra.mxu0 0
    %767 = vmatprep.subr.bf16.mxu0 0
    %768 = vmatpush1.bf16.msra.mxu0 0
    %769 = vmatprep.subr.bf16.mxu0 0
    %770 = vmatpush1.bf16.msra.mxu0 0
    %771 = vmatprep.subr.bf16.mxu0 0
    %772 = vmatpush1.bf16.msra.mxu0 0
    %773 = vmatprep.subr.bf16.mxu0 0
    %774 = vmatpush1.bf16.msra.mxu0 0
    %775 = vmatprep.subr.bf16.mxu0 0
    %776 = vmatpush1.bf16.msra.mxu0 0
    %777 = vmatprep.mubr.bf16.mxu0 0
    %778 = vmatmul.mubr.bf16.gmra.mrb[0].mxu0 %v677
    %v779 = vpop.f32.mrb[0].mxu0
    %v780 = vadd.f32 0.0, %v779
    %v781 = vpop.f32.mrb[0].mxu0
    %v782 = vpop.f32.mrb[0].mxu0
    %v783 = vadd.f32 0.0, %v782
    %v784 = vpop.f32.mrb[0].mxu0
    %785 = vmatprep.mubr.bf16.mxu0 0
    %786 = vmatmul.mubr.bf16.gmra.mrb[0].mxu0 %v678
    %v787 = vpop.f32.mrb[0].mxu0
    %v788 = vadd.f32 0.0, %v787
    %v789 = vpop.f32.mrb[0].mxu0
    %v790 = vpop.f32.mrb[0].mxu0
    %v791 = vadd.f32 0.0, %v790
    %v792 = vpop.f32.mrb[0].mxu0
    %793 = vdwg.mxu0
    %v810 = vunpack.c.l.b16 %v637
    %v811 = vunpack.c.l.b16 %v638
    %v812 = vunpack.c.l.b16 %v639
    %v813 = vunpack.c.l.b16 %v640
    %v814 = vunpack.c.l.b16 %v641
    %v815 = vunpack.c.l.b16 %v642
    %v816 = vunpack.c.l.b16 %v643
    %v817 = vunpack.c.l.b16 %v644
    %v818 = vunpack.c.l.b16 %v645
    %v819 = vunpack.c.l.b16 %v646
    %v820 = vunpack.c.l.b16 %v647
    %v821 = vunpack.c.l.b16 %v648
    %v822 = vunpack.c.l.b16 %v649
    %v823 = vunpack.c.l.b16 %v650
    %v824 = vunpack.c.l.b16 %v651
    %v825 = vunpack.c.l.b16 %v652
    %v826 = vpack.c.b16 %v811, %v810
    %v827 = vpack.c.b16 %v813, %v812
    %v828 = vpack.c.b16 %v815, %v814
    %v829 = vpack.c.b16 %v817, %v816
    %v830 = vpack.c.b16 %v819, %v818
    %v831 = vpack.c.b16 %v821, %v820
    %v832 = vpack.c.b16 %v823, %v822
    %v833 = vpack.c.b16 %v825, %v824
    %842 = vmatprep.subr.bf16.mxu0 0
    %843 = vmatpush1.bf16.msra.mxu0 %v826
    %844 = vmatprep.subr.bf16.mxu0 0
    %845 = vmatpush1.bf16.msra.mxu0 %v827
    %846 = vmatprep.subr.bf16.mxu0 0
    %847 = vmatpush1.bf16.msra.mxu0 %v828
    %848 = vmatprep.subr.bf16.mxu0 0
    %849 = vmatpush1.bf16.msra.mxu0 %v829
    %850 = vmatprep.subr.bf16.mxu0 0
    %851 = vmatpush1.bf16.msra.mxu0 %v830
    %852 = vmatprep.subr.bf16.mxu0 0
    %853 = vmatpush1.bf16.msra.mxu0 %v831
    %854 = vmatprep.subr.bf16.mxu0 0
    %855 = vmatpush1.bf16.msra.mxu0 %v832
    %856 = vmatprep.subr.bf16.mxu0 0
    %857 = vmatpush1.bf16.msra.mxu0 %v833
    %858 = vmatprep.subr.bf16.mxu0 0
    %859 = vmatpush1.bf16.msra.mxu0 0
    %860 = vmatprep.subr.bf16.mxu0 0
    %861 = vmatpush1.bf16.msra.mxu0 0
    %862 = vmatprep.subr.bf16.mxu0 0
    %863 = vmatpush1.bf16.msra.mxu0 0
    %864 = vmatprep.subr.bf16.mxu0 0
    %865 = vmatpush1.bf16.msra.mxu0 0
    %866 = vmatprep.subr.bf16.mxu0 0
    %867 = vmatpush1.bf16.msra.mxu0 0
    %868 = vmatprep.subr.bf16.mxu0 0
    %869 = vmatpush1.bf16.msra.mxu0 0
    %870 = vmatprep.subr.bf16.mxu0 0
    %871 = vmatpush1.bf16.msra.mxu0 0
    %872 = vmatprep.subr.bf16.mxu0 0
    %873 = vmatpush1.bf16.msra.mxu0 0
    %874 = vmatprep.mubr.bf16.mxu0 0
    %875 = vmatmul.mubr.bf16.gmra.mrb[0].mxu0 %v634
    %v876 = vpop.f32.mrb[0].mxu0
    %v877 = vadd.f32 %v780, %v876
    %v878 = vpop.f32.mrb[0].mxu0
    %v879 = vpop.f32.mrb[0].mxu0
    %v880 = vadd.f32 %v783, %v879
    %v881 = vpop.f32.mrb[0].mxu0
    %882 = vmatprep.mubr.bf16.mxu0 0
    %883 = vmatmul.mubr.bf16.gmra.mrb[0].mxu0 %v635
    %v884 = vpop.f32.mrb[0].mxu0
    %v885 = vadd.f32 %v788, %v884
    %v886 = vpop.f32.mrb[0].mxu0
    %v887 = vpop.f32.mrb[0].mxu0
    %v888 = vadd.f32 %v791, %v887
    %v889 = vpop.f32.mrb[0].mxu0
    %890 = vdwg.mxu0
    %s891 = scalar_lea.vmem [#allocation8], 128
    %v892 = vld [vmem:[%s891] sm:$0xf]
    %v893 = vld [vmem:[%s891 + $0x4] sm:$0xf]
    %v894 = vld [vmem:[%s891 + $0x8] sm:$0xf]
    %v895 = vld [vmem:[%s891 + $0xc] sm:$0xf]
    %v896 = vld [vmem:[%s891 + $0x10] sm:$0xf]
    %v897 = vld [vmem:[%s891 + $0x14] sm:$0xf]
    %v898 = vld [vmem:[%s891 + $0x18] sm:$0xf]
    %v899 = vld [vmem:[%s891 + $0x1c] sm:$0xf]
    %v900 = vld [vmem:[%s891 + $0x20] sm:$0xf]
    %v901 = vld [vmem:[%s891 + $0x24] sm:$0xf]
    %v902 = vld [vmem:[%s891 + $0x28] sm:$0xf]
    %v903 = vld [vmem:[%s891 + $0x2c] sm:$0xf]
    %v904 = vld [vmem:[%s891 + $0x30] sm:$0xf]
    %v905 = vld [vmem:[%s891 + $0x34] sm:$0xf]
    %v906 = vld [vmem:[%s891 + $0x38] sm:$0xf]
    %v907 = vld [vmem:[%s891 + $0x3c] sm:$0xf]
    %v924 = vunpack.c.l.b16 %v892
    %v925 = vunpack.c.l.b16 %v893
    %v926 = vunpack.c.l.b16 %v894
    %v927 = vunpack.c.l.b16 %v895
    %v928 = vunpack.c.l.b16 %v896
    %v929 = vunpack.c.l.b16 %v897
    %v930 = vunpack.c.l.b16 %v898
    %v931 = vunpack.c.l.b16 %v899
    %v932 = vunpack.c.l.b16 %v900
    %v933 = vunpack.c.l.b16 %v901
    %v934 = vunpack.c.l.b16 %v902
    %v935 = vunpack.c.l.b16 %v903
    %v936 = vunpack.c.l.b16 %v904
    %v937 = vunpack.c.l.b16 %v905
    %v938 = vunpack.c.l.b16 %v906
    %v939 = vunpack.c.l.b16 %v907
    %v940 = vpack.c.b16 %v925, %v924
    %v941 = vpack.c.b16 %v927, %v926
    %v942 = vpack.c.b16 %v929, %v928
    %v943 = vpack.c.b16 %v931, %v930
    %v944 = vpack.c.b16 %v933, %v932
    %v945 = vpack.c.b16 %v935, %v934
    %v946 = vpack.c.b16 %v937, %v936
    %v947 = vpack.c.b16 %v939, %v938
    %956 = vmatprep.subr.bf16.mxu0 0
    %957 = vmatpush1.bf16.msra.mxu0 %v940
    %958 = vmatprep.subr.bf16.mxu0 0
    %959 = vmatpush1.bf16.msra.mxu0 %v941
    %960 = vmatprep.subr.bf16.mxu0 0
    %961 = vmatpush1.bf16.msra.mxu0 %v942
    %962 = vmatprep.subr.bf16.mxu0 0
    %963 = vmatpush1.bf16.msra.mxu0 %v943
    %964 = vmatprep.subr.bf16.mxu0 0
    %965 = vmatpush1.bf16.msra.mxu0 %v944
    %966 = vmatprep.subr.bf16.mxu0 0
    %967 = vmatpush1.bf16.msra.mxu0 %v945
    %968 = vmatprep.subr.bf16.mxu0 0
    %969 = vmatpush1.bf16.msra.mxu0 %v946
    %970 = vmatprep.subr.bf16.mxu0 0
    %971 = vmatpush1.bf16.msra.mxu0 %v947
    %972 = vmatprep.subr.bf16.mxu0 0
    %973 = vmatpush1.bf16.msra.mxu0 0
    %974 = vmatprep.subr.bf16.mxu0 0
    %975 = vmatpush1.bf16.msra.mxu0 0
    %976 = vmatprep.subr.bf16.mxu0 0
    %977 = vmatpush1.bf16.msra.mxu0 0
    %978 = vmatprep.subr.bf16.mxu0 0
    %979 = vmatpush1.bf16.msra.mxu0 0
    %980 = vmatprep.subr.bf16.mxu0 0
    %981 = vmatpush1.bf16.msra.mxu0 0
    %982 = vmatprep.subr.bf16.mxu0 0
    %983 = vmatpush1.bf16.msra.mxu0 0
    %984 = vmatprep.subr.bf16.mxu0 0
    %985 = vmatpush1.bf16.msra.mxu0 0
    %986 = vmatprep.subr.bf16.mxu0 0
    %987 = vmatpush1.bf16.msra.mxu0 0
    %988 = vmatprep.mubr.bf16.mxu0 0
    %989 = vmatmul.mubr.bf16.gmra.mrb[0].mxu0 %v679
    %v990 = vpop.f32.mrb[0].mxu0
    %v991 = vadd.f32 0.0, %v990
    %v992 = vpop.f32.mrb[0].mxu0
    %v993 = vpop.f32.mrb[0].mxu0
    %v994 = vadd.f32 0.0, %v993
    %v995 = vpop.f32.mrb[0].mxu0
    %996 = vmatprep.mubr.bf16.mxu0 0
    %997 = vmatmul.mubr.bf16.gmra.mrb[0].mxu0 %v680
    %v998 = vpop.f32.mrb[0].mxu0
    %v999 = vadd.f32 0.0, %v998
    %v1000 = vpop.f32.mrb[0].mxu0
    %v1001 = vpop.f32.mrb[0].mxu0
    %v1002 = vadd.f32 0.0, %v1001
    %v1003 = vpop.f32.mrb[0].mxu0
    %1004 = vdwg.mxu0
    %v1005 = vadd.f32 %v877, %v991
    %v1006 = vadd.f32 %v880, %v994
    %v1007 = vadd.f32 %v885, %v999
    %v1008 = vadd.f32 %v888, %v1002
    %v1009 = vld [vmem:[%s6] sm:$0x1]
    %v1010 = vld [vmem:[%s7] sm:$0x1]
    %v1011 = vadd.f32 %v1005, %v1006
    %v1012 = vadd.f32 %v1011, %v1007
    %v1013 = vadd.f32 %v1012, %v1008
    %v1014 = vrot.slane %v1013, 4
    %v1015 = vadd.f32 %v1013, %v1014
    %v1016 = vrot.slane %v1015, 2
    %v1017 = vadd.f32 %v1015, %v1016
    %v1018 = vrot.slane %v1017, 1
    %v1019 = vadd.f32 %v1017, %v1018
    %v1020 = vmul.f32 %v1005, %v1005
    %v1021 = vmul.f32 %v1006, %v1006
    %v1022 = vmul.f32 %v1007, %v1007
    %v1023 = vmul.f32 %v1008, %v1008
    %v1024 = vadd.f32 %v1020, %v1021
    %v1025 = vadd.f32 %v1024, %v1022
    %v1026 = vadd.f32 %v1025, %v1023
    %v1027 = vrot.slane %v1026, 4
    %v1028 = vadd.f32 %v1026, %v1027
    %v1029 = vrot.slane %v1028, 2
    %v1030 = vadd.f32 %v1028, %v1029
    %v1031 = vrot.slane %v1030, 1
    %v1032 = vadd.f32 %v1030, %v1031
    %v1033 = vsel %vm567, %v1019, %v1032
    %1034 = vrot.lane.b32.xlu0 %v1033, 8
    %v1035 = vpop.permute.xlu0 %1034
    %v1036 = vadd.f32 %v1033, %v1035
    %1037 = vrot.lane.b32.xlu0 %v1036, 16
    %v1038 = vpop.permute.xlu0 %1037
    %v1039 = vadd.f32 %v1036, %v1038
    %1040 = vrot.lane.b32.xlu0 %v1039, 32
    %v1041 = vpop.permute.xlu0 %1040
    %v1042 = vadd.f32 %v1039, %v1041
    %1043 = vrot.lane.b32.xlu0 %v1042, 64
    %v1044 = vpop.permute.xlu0 %1043
    %v1045 = vadd.f32 %v1042, %v1044
    %v1046 = vmul.f32 %v1045, 0.001953125
    %v1047 = vmul.f32 %v1046, %v1046
    %v1049 = vrot.slane %v1047, 7
    %v1051 = vsub.f32 %v1046, %v1049
    %v1052 = vadd.f32 %v1051, 1e-05
    %v1053 = vrsqrt.pop %v1052
    %v1054 = vlaneseq
    %v1055 = vshrl.u32 %v1054, 7
    %v1056 = vsub.s32 0, %v1055
    %v1057 = vrot.slane %v1046, %v1056
    %v1058 = vsub.f32 %v1005, %v1057
    %v1059 = vsub.f32 %v1006, %v1057
    %v1060 = vsub.f32 %v1007, %v1057
    %v1061 = vsub.f32 %v1008, %v1057
    %v1063 = vlaneseq
    %v1064 = vshrl.u32 %v1063, 7
    %v1065 = vsub.s32 0, %v1064
    %v1066 = vrot.slane %v1009, %v1065
    %v1068 = vmul.f32 %v1053, %v1066
    %v1069 = vlaneseq
    %v1070 = vshrl.u32 %v1069, 7
    %v1071 = vsub.s32 1, %v1070
    %v1072 = vrot.slane %v1068, %v1071
    %v1073 = vmul.f32 %v1058, %v1072
    %v1074 = vmul.f32 %v1059, %v1072
    %v1075 = vmul.f32 %v1060, %v1072
    %v1076 = vmul.f32 %v1061, %v1072
    %v1078 = vlaneseq
    %v1079 = vshrl.u32 %v1078, 7
    %v1080 = vsub.s32 0, %v1079
    %v1081 = vrot.slane %v1010, %v1080
    %v1083 = vadd.f32 %v1073, %v1081
    %v1084 = vadd.f32 %v1074, %v1081
    %v1085 = vadd.f32 %v1075, %v1081
    %v1086 = vadd.f32 %v1076, %v1081
    %v1087 = vadd.f32 %v1083, %v86
    %v1088 = vadd.f32 %v1084, %v87
    %v1089 = vadd.f32 %v1085, %v88
    %v1090 = vadd.f32 %v1086, %v89
    %vm1091 = vcmp.ge.f32.partialorder %v1087, 0.0
    %vm1092 = vcmp.ge.f32.partialorder %v1088, 0.0
    %vm1093 = vcmp.ge.f32.partialorder %v1089, 0.0
    %vm1094 = vcmp.ge.f32.partialorder %v1090, 0.0
    %v1095 = vmul.f32 %v1087, 0.2
    %v1096 = vmul.f32 %v1088, 0.2
    %v1097 = vmul.f32 %v1089, 0.2
    %v1098 = vmul.f32 %v1090, 0.2
    %v1099 = vsel %vm1091, %v1087, %v1095
    %v1100 = vsel %vm1092, %v1088, %v1096
    %v1101 = vsel %vm1093, %v1089, %v1097
    %v1102 = vsel %vm1094, %v1090, %v1098
    %1103 = vst [vmem:[#allocation10] sm:$0xff] %v1099
    %1104 = vst [vmem:[#allocation10 + $0x8] sm:$0xff] %v1100
    %1105 = vst [vmem:[#allocation10 + $0x10] sm:$0xff] %v1101
    %1106 = vst [vmem:[#allocation10 + $0x18] sm:$0xff] %v1102
    // Predicated region
    $region50: #{tpu_custom_call.1} parent=1 // pred_check
      _
    $region51: #{tpu_custom_call.1} parent=1 // pred_check_branch
      %1108 = sbr.rel (0) target = $region53
    $region52: #{tpu_custom_call.1} parent=1 // pred_region
      %s1110 = ssub.s32 512, 512
      %1111 = vsyncadd [#allocation4], %s1110
      %s1112 = sshll.u32 [#allocation10], 4
      %s1113 = int_to_ptr.vmem [resolvable:$true] %s1112
      %1118 = dma.vmem_to_hbm [thread:$0]  %s1113, 512, %s8, [#allocation4], 128, 128, 8
    $region53: #{tpu_custom_call.1} parent=1 // pred_fallthru
      _
    // Predicated region
    $region54: #{tpu_custom_call.1} parent=1 // pred_check
      _
    $region55: #{tpu_custom_call.1} parent=1 // pred_check_branch
      %1120 = sbr.rel (0) target = $region57
    $region56: #{tpu_custom_call.1} parent=1 // pred_region
      %1121 = dma.done [#allocation4], 512
    $region57: #{tpu_custom_call.1} parent=1 // pred_fallthru
      _
    %1122 = vsyncpa [#allocation3], 1
    %1123 = vsyncpa [#allocation6], 1
    %1124 = vsyncpa [#allocation9], 1
    %1125 = vsyncpa [#allocation4], 1

</llo_original>
